<compile_context>
chip_gen: v7x
topology: tpu7x:2x2x1
jax: 0.10.0
libtpu: 0.0.40
codegen_flags: <defaults>
</compile_context>

<pallas_src>
import numpy as np
import jax
import jax.numpy as jnp
from jax.experimental import pallas as pl
from jax.experimental.pallas import tpu as pltpu


def _round_up(x, m):
    return ((x + m - 1) // m) * m


def _logit(p):
    """Convert a sigmoid-space threshold to logit space (sigmoid(x) > p  <=>  x > logit(p))."""
    p = float(p)
    if p <= 0.0:
        return -np.inf          # always "predicted positive" for finite logits
    if p >= 1.0:
        return np.inf           # never "predicted positive"
    return float(np.log(p) - np.log1p(-p))


def _fold_rows(x, n_groups):
    """(8*n_groups, D) -> (8, D) by summing sublane groups: pure VPU adds, no XLU."""
    acc = x[0:8, :]
    for s in range(1, n_groups):
        acc = acc + x[s * 8:(s + 1) * 8, :]
    return acc


def _make_pr_kernel(logit_thresholds, ignore_idx, use_external_weights, tile_rows):
    T = len(logit_thresholds)
    n_groups = tile_rows // 8

    def kernel(*refs):
        if use_external_weights:
            labels_ref, logits_ref, weights_ref, acc_ref = refs
        else:
            labels_ref, logits_ref, acc_ref = refs

        @pl.when(pl.program_id(1) == 0)
        def _init():
            acc_ref[...] = jnp.zeros_like(acc_ref)

        labels = labels_ref[...]                         # (tile_rows, D_pad) int32
        logits = logits_ref[...].astype(jnp.float32)     # raw logits; no sigmoid needed
        if use_external_weights:
            # Matches the PyTorch module: external weights are used as-is (no ignore
            # masking); ignore-labeled entries are neither "true" nor "false" anyway.
            weights = weights_ref[...].astype(jnp.float32)
        else:
            weights = (labels != ignore_idx).astype(jnp.float32)

        zeros = jnp.zeros_like(weights)
        wt = jnp.where(labels == 1, weights, zeros)      # weighted positive labels
        wf = jnp.where(labels == 0, weights, zeros)      # weighted negative labels

        acc_ref[0, 0] += _fold_rows(wt, n_groups)        # sum(w * trues)  lane-partials
        acc_ref[0, 1] += _fold_rows(wf, n_groups)        # sum(w * falses) lane-partials
        for t, thr in enumerate(logit_thresholds):       # static unroll over thresholds
            pred_pos = logits > thr                      # == (sigmoid(logits) > threshold)
            acc_ref[0, 2 + 2 * t] += _fold_rows(jnp.where(pred_pos, wt, zeros), n_groups)  # TP
            acc_ref[0, 3 + 2 * t] += _fold_rows(jnp.where(pred_pos, wf, zeros), n_groups)  # FP

    return kernel


def binary_metrics_pallas(labels2d, logits2d, thresholds, ignore_idx=-1, weights2d=None):
    """Returns (tp, tn, fp, fn), each a (T,) float32 array (T = number of thresholds)."""
    T = len(thresholds)
    use_w = weights2d is not None
    N, D = labels2d.shape

    # Lane-dense last dim; padded rows/cols get weight 0 (ignore label / zero weight).
    D_pad = max(128, _round_up(D, 128))

    # Row-tile: the largest multiple of 8 (capped at 512) whose double-buffered input
    # streams fit comfortably in scoped VMEM on every generation (incl. v7x's 64 MiB).
    bytes_per_row = D_pad * (4 + jnp.dtype(logits2d.dtype).itemsize + (4 if use_w else 0))
    budget = 8 * 1024 * 1024
    max_rows = max(8, (budget // (2 * bytes_per_row)) // 8 * 8)
    tile_n = int(max(8, min(512, max_rows, _round_up(N, 8))))

    n_tiles = -(-N // tile_n)
    C = 2 if n_tiles >= 2 else 1            # megacore split (v7x has 2 TCs; harmless on 1-TC chips)
    n_tiles = _round_up(n_tiles, C)
    K = n_tiles // C
    N_pad = n_tiles * tile_n

    labels_p = jnp.pad(labels2d, ((0, N_pad - N), (0, D_pad - D)), constant_values=ignore_idx)
    logits_p = jnp.pad(logits2d, ((0, N_pad - N), (0, D_pad - D)))
    args = [labels_p, logits_p]

    def row_spec():
        return pl.BlockSpec((tile_n, D_pad), lambda c, k: (c * K + k, 0))

    in_specs = [row_spec(), row_spec()]
    if use_w:
        weights_p = jnp.pad(weights2d.astype(jnp.float32), ((0, N_pad - N), (0, D_pad - D)))
        args.append(weights_p)
        in_specs.append(row_spec())

    Q = 2 * T + 2   # [WT, WF, TP_0, FP_0, TP_1, FP_1, ...]
    kernel = _make_pr_kernel(tuple(_logit(t) for t in thresholds), ignore_idx, use_w, tile_n)

    # TODO(synk): labels could be packed to int8 (and bf16 logits accepted natively) to
    # further cut HBM traffic when label values are guaranteed to fit the narrow dtype.
    acc = pl.pallas_call(
        kernel,
        out_shape=jax.ShapeDtypeStruct((C, Q, 8, D_pad), jnp.float32),
        grid=(C, K),
        in_specs=in_specs,
        out_specs=pl.BlockSpec((1, Q, 8, D_pad), lambda c, k: (c, 0, 0, 0)),
        compiler_params=pltpu.CompilerParams(
            dimension_semantics=("parallel", "arbitrary"),
            vmem_limit_bytes=32 * 1024 * 1024),
    )(*args)

    # Tiny final reduction (and the cross-lane part) done in XLA outside the hot loop.
    sums = jnp.sum(acc, axis=(0, 2, 3))       # (2T+2,)
    wt_total, wf_total = sums[0], sums[1]
    tp = sums[2::2]
    fp = sums[3::2]
    fn = wt_total - tp                        # FN = sum(w*trues)  - TP
    tn = wf_total - fp                        # TN = sum(w*falses) - FP
    return tp, tn, fp, fn


class PrecisionRecallPallas:
    """JAX/Pallas port of the PyTorch PrecisionRecall module (single-logit sigmoid path)."""

    def __init__(self, dim=1, ignore_idx=-1, thresholds=0.5):
        if not isinstance(thresholds, (list, tuple)):
            thresholds = [thresholds]
        self._thresholds = tuple(float(t) for t in thresholds)
        T = len(self._thresholds)
        # Buffers (deterministic zero init, mirroring register_buffer(...).zero_()).
        self.prec_total = jnp.zeros((T,), jnp.float32)
        self.prec_count = jnp.zeros((T,), jnp.float32)
        self.rec_total = jnp.zeros((T,), jnp.float32)
        self.rec_count = jnp.zeros((T,), jnp.float32)
        self._ignore_idx = ignore_idx
        self._dim = dim

    def forward(self, labels, preds, weights=None):
        if preds.shape[self._dim] != 1:
            # TODO(synk): 2-class softmax path (preds.shape[dim] == 2) not ported; the
            # reference slices `[..., -1:]` of the softmax, which is ambiguous w.r.t. dim.
            raise NotImplementedError("only the single-logit (sigmoid) path is implemented")

        N = labels.shape[0]
        D = int(np.prod(labels.shape[1:])) if labels.ndim > 1 else 1
        labels2d = labels.reshape(N, D).astype(jnp.int32)
        logits2d = preds.reshape(N, D)      # keep the caller's float dtype (bf16 stays bf16)
        weights2d = None if weights is None else weights.reshape(N, D).astype(jnp.float32)

        tp, tn, fp, fn = binary_metrics_pallas(
            labels2d, logits2d, self._thresholds, self._ignore_idx, weights2d)
        del tn  # not needed for precision/recall, kept for parity with the reference

        rec_c = tp + fn
        prec_c = tp + fp
        # `if rec_count > 0:` / `if prec_count > 0:` gating, expressed data-dependently.
        self.rec_count = self.rec_count + jnp.where(rec_c > 0, rec_c, 0.0)
        self.rec_total = self.rec_total + jnp.where(rec_c > 0, tp, 0.0)
        self.prec_count = self.prec_count + jnp.where(prec_c > 0, prec_c, 0.0)
        self.prec_total = self.prec_total + jnp.where(prec_c > 0, tp, 0.0)
        return self.value

    @property
    def value(self):
        prec_count = jnp.maximum(self.prec_count, 1.0)
        rec_count = jnp.maximum(self.rec_count, 1.0)
        return self.prec_total / prec_count, self.rec_total / rec_count

    @property
    def thresholds(self):
        return self._thresholds


def _ref_precision_recall(labels, preds, thresholds, ignore_idx=-1, weights=None):
    """Pure-numpy reference of the PyTorch module's semantics (sigmoid path)."""
    N = labels.shape[0]
    lab = np.asarray(labels).reshape(N, -1)
    lg = np.asarray(preds).astype(np.float64).reshape(N, -1)
    sc = 1.0 / (1.0 + np.exp(-lg))
    if weights is None:
        w = (lab != ignore_idx).astype(np.float64)
    else:
        w = np.asarray(weights).astype(np.float64).reshape(lab.shape)
    T = len(thresholds)
    prec_t, prec_c = np.zeros(T), np.zeros(T)
    rec_t, rec_c = np.zeros(T), np.zeros(T)
    for i, thr in enumerate(thresholds):
        pp = sc > thr
        tp = (w * ((lab == 1) & pp)).sum()
        fp = (w * ((lab == 0) & pp)).sum()
        fn = (w * ((lab == 1) & ~pp)).sum()
        if tp + fn > 0:
            rec_c[i] += tp + fn
            rec_t[i] += tp
        if tp + fp > 0:
            prec_c[i] += tp + fp
            prec_t[i] += tp
    return prec_t / np.maximum(prec_c, 1.0), rec_t / np.maximum(rec_c, 1.0)


if __name__ == "__main__":
    key = jax.random.PRNGKey(0)
    k1, k2, k3 = jax.random.split(key, 3)

    # Small shapes: batch=2, single-logit channel, 16x16 spatial map flattened to D=256.
    N, D = 2, 16 * 16
    labels = jax.random.randint(k1, (N, D), -1, 2, dtype=jnp.int32)   # {-1 (ignore), 0, 1}
    preds = jax.random.normal(k2, (N, 1, D), dtype=jnp.float32)       # raw logits, C == 1
    ext_weights = jax.random.uniform(k3, (N, D), dtype=jnp.float32)
    thresholds = [0.3, 0.5, 0.7]

    # Path 1: implicit weights (ignore-index mask).
    m1 = PrecisionRecallPallas(dim=1, ignore_idx=-1, thresholds=thresholds)
    prec1, rec1 = m1.forward(labels, preds)
    prec1 = np.asarray(jax.block_until_ready(prec1))
    rec1 = np.asarray(jax.block_until_ready(rec1))
    prec1_ref, rec1_ref = _ref_precision_recall(labels, preds, thresholds)
    assert np.allclose(prec1, prec1_ref, atol=1e-4), (prec1, prec1_ref)
    assert np.allclose(rec1, rec1_ref, atol=1e-4), (rec1, rec1_ref)

    # Path 2: explicit external weights.
    m2 = PrecisionRecallPallas(dim=1, ignore_idx=-1, thresholds=thresholds)
    prec2, rec2 = m2.forward(labels, preds, ext_weights)
    prec2 = np.asarray(jax.block_until_ready(prec2))
    rec2 = np.asarray(jax.block_until_ready(rec2))
    prec2_ref, rec2_ref = _ref_precision_recall(labels, preds, thresholds, weights=ext_weights)
    assert np.allclose(prec2, prec2_ref, atol=1e-4), (prec2, prec2_ref)
    assert np.allclose(rec2, rec2_ref, atol=1e-4), (rec2, rec2_ref)

    print("KERNEL_OK")
</pallas_src>

<mosaic_0001>
module attributes {stable_mosaic.version = 11 : i64} {
  func.func @kernel(%arg0: i32, %arg1: i32, %arg2: memref<8x256xi32, #tpu.memory_space<vmem>>, %arg3: memref<8x256xf32, #tpu.memory_space<vmem>>, %arg4: memref<1x8x8x256xf32, #tpu.memory_space<vmem>>) attributes {dimension_semantics = [#tpu.dimension_semantics<parallel>, #tpu.dimension_semantics<arbitrary>], iteration_bounds = array<i64: 1, 1>, scalar_prefetch = 0 : i64, scratch_operands = 0 : i64, tpu.core_type = #tpu.core_type<tc>, window_params = [{transform_indices = @transform_0, window_bounds = array<i64: 8, 256>}, {transform_indices = @transform_1, window_bounds = array<i64: 8, 256>}, {transform_indices = @transform_2, window_bounds = array<i64: 1, 8, 8, 256>}]} {
    %c0_i32 = arith.constant 0 : i32
    %0 = arith.cmpi eq, %arg1, %c0_i32 : i32
    %1 = arith.extui %0 : i1 to i32
    %c0_i32_0 = arith.constant 0 : i32
    %2 = arith.cmpi ne, %1, %c0_i32_0 : i32
    scf.if %2 {
      %cst_65 = arith.constant 0.000000e+00 : f32
      %76 = vector.broadcast %cst_65 : f32 to vector<1x8x8x256xf32>
      %c0_66 = arith.constant 0 : index
      %c0_67 = arith.constant 0 : index
      %c0_68 = arith.constant 0 : index
      %c0_69 = arith.constant 0 : index
      %77 = vector.load %arg4[%c0_66, %c0_67, %c0_68, %c0_69] : memref<1x8x8x256xf32, #tpu.memory_space<vmem>>, vector<1x8x8x256xf32>
      tpu.vector_store %arg4[%c0_66, %c0_67, %c0_68, %c0_69], %76 {strides = array<i32>} : memref<1x8x8x256xf32, #tpu.memory_space<vmem>>, vector<1x8x8x256xf32>,
    } else {
    }
    %c0 = arith.constant 0 : index
    %c0_1 = arith.constant 0 : index
    %3 = vector.load %arg2[%c0, %c0_1] : memref<8x256xi32, #tpu.memory_space<vmem>>, vector<8x256xi32>
    %c0_2 = arith.constant 0 : index
    %c0_3 = arith.constant 0 : index
    %4 = vector.load %arg3[%c0_2, %c0_3] : memref<8x256xf32, #tpu.memory_space<vmem>>, vector<8x256xf32>
    %c-1_i32 = arith.constant -1 : i32
    %5 = vector.broadcast %c-1_i32 : i32 to vector<8x256xi32>
    %6 = arith.cmpi ne, %3, %5 : vector<8x256xi32>
    %7 = arith.extui %6 : vector<8x256xi1> to vector<8x256xi32>
    %8 = arith.sitofp %7 : vector<8x256xi32> to vector<8x256xf32>
    %cst = arith.constant 0.000000e+00 : f32
    %9 = vector.broadcast %cst : f32 to vector<8x256xf32>
    %c1_i32 = arith.constant 1 : i32
    %10 = vector.broadcast %c1_i32 : i32 to vector<8x256xi32>
    %11 = arith.cmpi eq, %3, %10 : vector<8x256xi32>
    %12 = arith.select %11, %8, %9 : vector<8x256xi1>, vector<8x256xf32>
    %c0_i32_4 = arith.constant 0 : i32
    %13 = vector.broadcast %c0_i32_4 : i32 to vector<8x256xi32>
    %14 = arith.cmpi eq, %3, %13 : vector<8x256xi32>
    %15 = arith.select %14, %8, %9 : vector<8x256xi1>, vector<8x256xf32>
    %c0_5 = arith.constant 0 : index
    %c0_6 = arith.constant 0 : index
    %c0_7 = arith.constant 0 : index
    %c0_8 = arith.constant 0 : index
    %16 = vector.load %arg4[%c0_5, %c0_6, %c0_7, %c0_8] : memref<1x8x8x256xf32, #tpu.memory_space<vmem>>, vector<1x1x8x256xf32>
    %17 = vector.shape_cast %16 : vector<1x1x8x256xf32> to vector<8x256xf32>
    %18 = arith.addf %17, %12 : vector<8x256xf32>
    %c0_9 = arith.constant 0 : index
    %c0_10 = arith.constant 0 : index
    %c0_11 = arith.constant 0 : index
    %c0_12 = arith.constant 0 : index
    %19 = vector.load %arg4[%c0_9, %c0_10, %c0_11, %c0_12] : memref<1x8x8x256xf32, #tpu.memory_space<vmem>>, vector<1x1x8x256xf32>
    %20 = vector.shape_cast %19 : vector<1x1x8x256xf32> to vector<8x256xf32>
    %21 = vector.shape_cast %18 : vector<8x256xf32> to vector<1x1x8x256xf32>
    tpu.vector_store %arg4[%c0_9, %c0_10, %c0_11, %c0_12], %21 {strides = array<i32>} : memref<1x8x8x256xf32, #tpu.memory_space<vmem>>, vector<1x1x8x256xf32>,
    %c0_13 = arith.constant 0 : index
    %c1 = arith.constant 1 : index
    %c0_14 = arith.constant 0 : index
    %c0_15 = arith.constant 0 : index
    %22 = vector.load %arg4[%c0_13, %c1, %c0_14, %c0_15] : memref<1x8x8x256xf32, #tpu.memory_space<vmem>>, vector<1x1x8x256xf32>
    %23 = vector.shape_cast %22 : vector<1x1x8x256xf32> to vector<8x256xf32>
    %24 = arith.addf %23, %15 : vector<8x256xf32>
    %c0_16 = arith.constant 0 : index
    %c1_17 = arith.constant 1 : index
    %c0_18 = arith.constant 0 : index
    %c0_19 = arith.constant 0 : index
    %25 = vector.load %arg4[%c0_16, %c1_17, %c0_18, %c0_19] : memref<1x8x8x256xf32, #tpu.memory_space<vmem>>, vector<1x1x8x256xf32>
    %26 = vector.shape_cast %25 : vector<1x1x8x256xf32> to vector<8x256xf32>
    %27 = vector.shape_cast %24 : vector<8x256xf32> to vector<1x1x8x256xf32>
    tpu.vector_store %arg4[%c0_16, %c1_17, %c0_18, %c0_19], %27 {strides = array<i32>} : memref<1x8x8x256xf32, #tpu.memory_space<vmem>>, vector<1x1x8x256xf32>,
    %cst_20 = arith.constant -0.847297847 : f32
    %28 = vector.broadcast %cst_20 : f32 to vector<8x256xf32>
    %29 = arith.cmpf ogt, %4, %28 : vector<8x256xf32>
    %c0_21 = arith.constant 0 : index
    %c2 = arith.constant 2 : index
    %c0_22 = arith.constant 0 : index
    %c0_23 = arith.constant 0 : index
    %30 = vector.load %arg4[%c0_21, %c2, %c0_22, %c0_23] : memref<1x8x8x256xf32, #tpu.memory_space<vmem>>, vector<1x1x8x256xf32>
    %31 = vector.shape_cast %30 : vector<1x1x8x256xf32> to vector<8x256xf32>
    %32 = arith.select %29, %12, %9 : vector<8x256xi1>, vector<8x256xf32>
    %33 = arith.addf %31, %32 : vector<8x256xf32>
    %c0_24 = arith.constant 0 : index
    %c2_25 = arith.constant 2 : index
    %c0_26 = arith.constant 0 : index
    %c0_27 = arith.constant 0 : index
    %34 = vector.load %arg4[%c0_24, %c2_25, %c0_26, %c0_27] : memref<1x8x8x256xf32, #tpu.memory_space<vmem>>, vector<1x1x8x256xf32>
    %35 = vector.shape_cast %34 : vector<1x1x8x256xf32> to vector<8x256xf32>
    %36 = vector.shape_cast %33 : vector<8x256xf32> to vector<1x1x8x256xf32>
    tpu.vector_store %arg4[%c0_24, %c2_25, %c0_26, %c0_27], %36 {strides = array<i32>} : memref<1x8x8x256xf32, #tpu.memory_space<vmem>>, vector<1x1x8x256xf32>,
    %c0_28 = arith.constant 0 : index
    %c3 = arith.constant 3 : index
    %c0_29 = arith.constant 0 : index
    %c0_30 = arith.constant 0 : index
    %37 = vector.load %arg4[%c0_28, %c3, %c0_29, %c0_30] : memref<1x8x8x256xf32, #tpu.memory_space<vmem>>, vector<1x1x8x256xf32>
    %38 = vector.shape_cast %37 : vector<1x1x8x256xf32> to vector<8x256xf32>
    %39 = arith.select %29, %15, %9 : vector<8x256xi1>, vector<8x256xf32>
    %40 = arith.addf %38, %39 : vector<8x256xf32>
    %c0_31 = arith.constant 0 : index
    %c3_32 = arith.constant 3 : index
    %c0_33 = arith.constant 0 : index
    %c0_34 = arith.constant 0 : index
    %41 = vector.load %arg4[%c0_31, %c3_32, %c0_33, %c0_34] : memref<1x8x8x256xf32, #tpu.memory_space<vmem>>, vector<1x1x8x256xf32>
    %42 = vector.shape_cast %41 : vector<1x1x8x256xf32> to vector<8x256xf32>
    %43 = vector.shape_cast %40 : vector<8x256xf32> to vector<1x1x8x256xf32>
    tpu.vector_store %arg4[%c0_31, %c3_32, %c0_33, %c0_34], %43 {strides = array<i32>} : memref<1x8x8x256xf32, #tpu.memory_space<vmem>>, vector<1x1x8x256xf32>,
    %cst_35 = arith.constant 0.000000e+00 : f32
    %44 = vector.broadcast %cst_35 : f32 to vector<8x256xf32>
    %45 = arith.cmpf ogt, %4, %44 : vector<8x256xf32>
    %c0_36 = arith.constant 0 : index
    %c4 = arith.constant 4 : index
    %c0_37 = arith.constant 0 : index
    %c0_38 = arith.constant 0 : index
    %46 = vector.load %arg4[%c0_36, %c4, %c0_37, %c0_38] : memref<1x8x8x256xf32, #tpu.memory_space<vmem>>, vector<1x1x8x256xf32>
    %47 = vector.shape_cast %46 : vector<1x1x8x256xf32> to vector<8x256xf32>
    %48 = arith.select %45, %12, %9 : vector<8x256xi1>, vector<8x256xf32>
    %49 = arith.addf %47, %48 : vector<8x256xf32>
    %c0_39 = arith.constant 0 : index
    %c4_40 = arith.constant 4 : index
    %c0_41 = arith.constant 0 : index
    %c0_42 = arith.constant 0 : index
    %50 = vector.load %arg4[%c0_39, %c4_40, %c0_41, %c0_42] : memref<1x8x8x256xf32, #tpu.memory_space<vmem>>, vector<1x1x8x256xf32>
    %51 = vector.shape_cast %50 : vector<1x1x8x256xf32> to vector<8x256xf32>
    %52 = vector.shape_cast %49 : vector<8x256xf32> to vector<1x1x8x256xf32>
    tpu.vector_store %arg4[%c0_39, %c4_40, %c0_41, %c0_42], %52 {strides = array<i32>} : memref<1x8x8x256xf32, #tpu.memory_space<vmem>>, vector<1x1x8x256xf32>,
    %c0_43 = arith.constant 0 : index
    %c5 = arith.constant 5 : index
    %c0_44 = arith.constant 0 : index
    %c0_45 = arith.constant 0 : index
    %53 = vector.load %arg4[%c0_43, %c5, %c0_44, %c0_45] : memref<1x8x8x256xf32, #tpu.memory_space<vmem>>, vector<1x1x8x256xf32>
    %54 = vector.shape_cast %53 : vector<1x1x8x256xf32> to vector<8x256xf32>
    %55 = arith.select %45, %15, %9 : vector<8x256xi1>, vector<8x256xf32>
    %56 = arith.addf %54, %55 : vector<8x256xf32>
    %c0_46 = arith.constant 0 : index
    %c5_47 = arith.constant 5 : index
    %c0_48 = arith.constant 0 : index
    %c0_49 = arith.constant 0 : index
    %57 = vector.load %arg4[%c0_46, %c5_47, %c0_48, %c0_49] : memref<1x8x8x256xf32, #tpu.memory_space<vmem>>, vector<1x1x8x256xf32>
    %58 = vector.shape_cast %57 : vector<1x1x8x256xf32> to vector<8x256xf32>
    %59 = vector.shape_cast %56 : vector<8x256xf32> to vector<1x1x8x256xf32>
    tpu.vector_store %arg4[%c0_46, %c5_47, %c0_48, %c0_49], %59 {strides = array<i32>} : memref<1x8x8x256xf32, #tpu.memory_space<vmem>>, vector<1x1x8x256xf32>,
    %cst_50 = arith.constant 0.847297847 : f32
    %60 = vector.broadcast %cst_50 : f32 to vector<8x256xf32>
    %61 = arith.cmpf ogt, %4, %60 : vector<8x256xf32>
    %c0_51 = arith.constant 0 : index
    %c6 = arith.constant 6 : index
    %c0_52 = arith.constant 0 : index
    %c0_53 = arith.constant 0 : index
    %62 = vector.load %arg4[%c0_51, %c6, %c0_52, %c0_53] : memref<1x8x8x256xf32, #tpu.memory_space<vmem>>, vector<1x1x8x256xf32>
    %63 = vector.shape_cast %62 : vector<1x1x8x256xf32> to vector<8x256xf32>
    %64 = arith.select %61, %12, %9 : vector<8x256xi1>, vector<8x256xf32>
    %65 = arith.addf %63, %64 : vector<8x256xf32>
    %c0_54 = arith.constant 0 : index
    %c6_55 = arith.constant 6 : index
    %c0_56 = arith.constant 0 : index
    %c0_57 = arith.constant 0 : index
    %66 = vector.load %arg4[%c0_54, %c6_55, %c0_56, %c0_57] : memref<1x8x8x256xf32, #tpu.memory_space<vmem>>, vector<1x1x8x256xf32>
    %67 = vector.shape_cast %66 : vector<1x1x8x256xf32> to vector<8x256xf32>
    %68 = vector.shape_cast %65 : vector<8x256xf32> to vector<1x1x8x256xf32>
    tpu.vector_store %arg4[%c0_54, %c6_55, %c0_56, %c0_57], %68 {strides = array<i32>} : memref<1x8x8x256xf32, #tpu.memory_space<vmem>>, vector<1x1x8x256xf32>,
    %c0_58 = arith.constant 0 : index
    %c7 = arith.constant 7 : index
    %c0_59 = arith.constant 0 : index
    %c0_60 = arith.constant 0 : index
    %69 = vector.load %arg4[%c0_58, %c7, %c0_59, %c0_60] : memref<1x8x8x256xf32, #tpu.memory_space<vmem>>, vector<1x1x8x256xf32>
    %70 = vector.shape_cast %69 : vector<1x1x8x256xf32> to vector<8x256xf32>
    %71 = arith.select %61, %15, %9 : vector<8x256xi1>, vector<8x256xf32>
    %72 = arith.addf %70, %71 : vector<8x256xf32>
    %c0_61 = arith.constant 0 : index
    %c7_62 = arith.constant 7 : index
    %c0_63 = arith.constant 0 : index
    %c0_64 = arith.constant 0 : index
    %73 = vector.load %arg4[%c0_61, %c7_62, %c0_63, %c0_64] : memref<1x8x8x256xf32, #tpu.memory_space<vmem>>, vector<1x1x8x256xf32>
    %74 = vector.shape_cast %73 : vector<1x1x8x256xf32> to vector<8x256xf32>
    %75 = vector.shape_cast %72 : vector<8x256xf32> to vector<1x1x8x256xf32>
    tpu.vector_store %arg4[%c0_61, %c7_62, %c0_63, %c0_64], %75 {strides = array<i32>} : memref<1x8x8x256xf32, #tpu.memory_space<vmem>>, vector<1x1x8x256xf32>,
    return
  }
  func.func @transform_0(%arg0: i32, %arg1: i32) -> (i32, i32) {
    %c1_i32 = arith.constant 1 : i32
    %0 = arith.muli %arg0, %c1_i32 : i32
    %1 = arith.addi %0, %arg1 : i32
    %c0_i32 = arith.constant 0 : i32
    %c0_i32_0 = arith.constant 0 : i32
    return %1, %c0_i32 : i32, i32
  }
  func.func @transform_1(%arg0: i32, %arg1: i32) -> (i32, i32) {
    %c1_i32 = arith.constant 1 : i32
    %0 = arith.muli %arg0, %c1_i32 : i32
    %1 = arith.addi %0, %arg1 : i32
    %c0_i32 = arith.constant 0 : i32
    %c0_i32_0 = arith.constant 0 : i32
    return %1, %c0_i32 : i32, i32
  }
  func.func @transform_2(%arg0: i32, %arg1: i32) -> (i32, i32, i32, i32) {
    %c0_i32 = arith.constant 0 : i32
    %c0_i32_0 = arith.constant 0 : i32
    %c0_i32_1 = arith.constant 0 : i32
    %c0_i32_2 = arith.constant 0 : i32
    return %arg0, %c0_i32, %c0_i32_0, %c0_i32_1 : i32, i32, i32, i32
  }
}

</mosaic_0001>

<llo_original>
// kernel: tpu_custom_call.1
$region0: #{tpu_custom_call.1}
  #allocation0 [shape = 'u32[]', space=smem, size = 0x4, offset = 0x4, fixed_abs, tag = 'smem constant byte address 0x4 - core index']
  #allocation1 [shape = 'u32[144,128]{1,0:T(1,128)}', space=vmem, size = 0x12000, scoped, tag = 'internal scratch']
  %s0 = inlined_call_operand.hbm [shape: s32[8,256], index: 0, kind: input, shape index: {}]
  %s1 = inlined_call_operand.hbm [shape: f32[8,256], index: 1, kind: input, shape index: {}]
  %s2 = inlined_call_operand.hbm [shape: f32[1,8,8,256], index: 2, kind: output, shape index: {}]
  %s3 = sld [smem:[#allocation0]]
  $region30: #{tpu_custom_call.1} parent=0
    _
  %s5 = ssub.s32 1, %s3
  %s6 = scalar_select 0, %s5, %s3
  $region1: #{tpu_custom_call.1} parent=0
    #allocation2 [shape = 'u8[8192]{0}', space=vmem, size = 0x2000, scoped, tag = 'input window, operand 0, single buffered']
    #allocation3 [shape = 's32[1]{0}', space=sflag, size = 0x4, scoped, tag = 'scoped memory for tpu_custom_call.1']
    #allocation4 [shape = 's32[1]{0}', space=sflag, size = 0x4, scoped, tag = 'scoped memory for tpu_custom_call.1']
    #allocation5 [shape = 'u8[8192]{0}', space=vmem, size = 0x2000, scoped, tag = 'input window, operand 1, single buffered']
    #allocation6 [shape = 's32[1]{0}', space=sflag, size = 0x4, scoped, tag = 'scoped memory for tpu_custom_call.1']
    #allocation7 [shape = 'u8[65536]{0}', space=vmem, size = 0x10000, scoped, tag = 'output window, operand 0, single buffered']
    %7 = vsyncpa [#allocation3], 0
    %8 = vsyncpa [#allocation6], 0
    %9 = vsyncpa [#allocation4], 0
    // Predicated region
    $region2: #{tpu_custom_call.1} parent=1 // pred_check
      _
    $region3: #{tpu_custom_call.1} parent=1 // pred_check_branch
      %11 = sbr.rel (0) target = $region5
    $region4: #{tpu_custom_call.1} parent=1 // pred_region
      %s12 = sadd.s32 0, 0
      %s14 = ssub.s32 256, 256
      %15 = vsyncadd [#allocation3], %s14
      %s16 = smul.addr %s12, 2
      %s17 = smul.addr %s16, 128
      %s18 = scalar_lea.hbm %s0, %s17
      %s20 = sshll.u32 [#allocation2], 4
      %s21 = int_to_ptr.vmem [resolvable:$true] %s20
      %23 = dma.hbm_to_vmem [thread:$0]  %s18, 256, %s21, [#allocation3]
    $region5: #{tpu_custom_call.1} parent=1 // pred_fallthru
      _
    // Predicated region
    $region6: #{tpu_custom_call.1} parent=1 // pred_check
      _
    $region7: #{tpu_custom_call.1} parent=1 // pred_check_branch
      %25 = sbr.rel (0) target = $region9
    $region8: #{tpu_custom_call.1} parent=1 // pred_region
      %s26 = sadd.s32 0, 0
      %s28 = ssub.s32 256, 256
      %29 = vsyncadd [#allocation6], %s28
      %s30 = smul.addr %s26, 2
      %s31 = smul.addr %s30, 128
      %s32 = scalar_lea.hbm %s1, %s31
      %s34 = sshll.u32 [#allocation5], 4
      %s35 = int_to_ptr.vmem [resolvable:$true] %s34
      %37 = dma.hbm_to_vmem [thread:$0]  %s32, 256, %s35, [#allocation6]
    $region9: #{tpu_custom_call.1} parent=1 // pred_fallthru
      _
    // Predicated region
    $region10: #{tpu_custom_call.1} parent=1 // pred_check
      _
    $region11: #{tpu_custom_call.1} parent=1 // pred_check_branch
      %39 = sbr.rel (0) target = $region13
    $region12: #{tpu_custom_call.1} parent=1 // pred_region
      %40 = dma.done [#allocation3], 256
    $region13: #{tpu_custom_call.1} parent=1 // pred_fallthru
      _
    // Predicated region
    $region14: #{tpu_custom_call.1} parent=1 // pred_check
      _
    $region15: #{tpu_custom_call.1} parent=1 // pred_check_branch
      %42 = sbr.rel (0) target = $region17
    $region16: #{tpu_custom_call.1} parent=1 // pred_region
      %43 = dma.done [#allocation6], 256
    $region17: #{tpu_custom_call.1} parent=1 // pred_fallthru
      _
    %s44 = sadd.s32 0, 0
    %s45 = sadd.s32 0, 0
    %p46 = scmp.eq.s32.totalorder 0, 0
    // Predicated region
    $region18: #{tpu_custom_call.1} parent=1 // pred_check
      %p47 = pneg %p46
    $region19: #{tpu_custom_call.1} parent=1 // pred_check_branch
      %49 = sbr.rel (%p47) target = $region21
    $region20: #{tpu_custom_call.1} parent=1 // pred_region
      %50 = vst [vmem:[#allocation7] sm:$0xff] 0.0
      %51 = vst [vmem:[#allocation7 + $0x8] sm:$0xff] 0.0
      %52 = vst [vmem:[#allocation7 + $0x10] sm:$0xff] 0.0
      %53 = vst [vmem:[#allocation7 + $0x18] sm:$0xff] 0.0
      %54 = vst [vmem:[#allocation7 + $0x20] sm:$0xff] 0.0
      %55 = vst [vmem:[#allocation7 + $0x28] sm:$0xff] 0.0
      %56 = vst [vmem:[#allocation7 + $0x30] sm:$0xff] 0.0
      %57 = vst [vmem:[#allocation7 + $0x38] sm:$0xff] 0.0
      %58 = vst [vmem:[#allocation7 + $0x40] sm:$0xff] 0.0
      %59 = vst [vmem:[#allocation7 + $0x48] sm:$0xff] 0.0
      %60 = vst [vmem:[#allocation7 + $0x50] sm:$0xff] 0.0
      %61 = vst [vmem:[#allocation7 + $0x58] sm:$0xff] 0.0
      %62 = vst [vmem:[#allocation7 + $0x60] sm:$0xff] 0.0
      %63 = vst [vmem:[#allocation7 + $0x68] sm:$0xff] 0.0
      %64 = vst [vmem:[#allocation7 + $0x70] sm:$0xff] 0.0
      %65 = vst [vmem:[#allocation7 + $0x78] sm:$0xff] 0.0
    $region21: #{tpu_custom_call.1} parent=1 // pred_fallthru
      _
    %v66 = vld [vmem:[#allocation2] sm:$0xff]
    %v67 = vld [vmem:[#allocation2 + $0x8] sm:$0xff]
    %v68 = vld [vmem:[#allocation5] sm:$0xff]
    %v69 = vld [vmem:[#allocation5 + $0x8] sm:$0xff]
    %vm70 = vcmp.ne.s32.totalorder %v66, 4294967295
    %vm71 = vcmp.ne.s32.totalorder %v67, 4294967295
    %v72 = vsel %vm70, 1, 0
    %v73 = vsel %vm71, 1, 0
    %v74 = vcvt.s32.f32 %v72
    %v75 = vcvt.s32.f32 %v73
    %vm76 = vcmp.eq.s32.totalorder %v66, 1
    %vm77 = vcmp.eq.s32.totalorder %v67, 1
    %v78 = vsel %vm76, %v74, 0.0
    %v79 = vsel %vm77, %v75, 0.0
    %vm80 = vcmp.eq.s32.totalorder %v66, 0
    %vm81 = vcmp.eq.s32.totalorder %v67, 0
    %v82 = vsel %vm80, %v74, 0.0
    %v83 = vsel %vm81, %v75, 0.0
    %v84 = vld [vmem:[#allocation7] sm:$0xff]
    %v85 = vld [vmem:[#allocation7 + $0x8] sm:$0xff]
    %v86 = vadd.f32 %v84, %v78
    %v87 = vadd.f32 %v85, %v79
    %88 = vst [vmem:[#allocation7] sm:$0xff] %v86
    %89 = vst [vmem:[#allocation7 + $0x8] sm:$0xff] %v87
    %s90 = scalar_lea.vmem [#allocation7], 16
    %v91 = vld [vmem:[%s90] sm:$0xff]
    %v92 = vld [vmem:[%s90 + $0x8] sm:$0xff]
    %v93 = vadd.f32 %v91, %v82
    %v94 = vadd.f32 %v92, %v83
    %95 = vst [vmem:[%s90] sm:$0xff] %v93
    %96 = vst [vmem:[%s90 + $0x8] sm:$0xff] %v94
    %vm97 = vcmp.gt.f32.partialorder %v68, -0.84729785
    %vm98 = vcmp.gt.f32.partialorder %v69, -0.84729785
    %s99 = scalar_lea.vmem [#allocation7], 32
    %v100 = vld [vmem:[%s99] sm:$0xff]
    %v101 = vld [vmem:[%s99 + $0x8] sm:$0xff]
    %v102 = vsel %vm97, %v78, 0.0
    %v103 = vsel %vm98, %v79, 0.0
    %v104 = vadd.f32 %v100, %v102
    %v105 = vadd.f32 %v101, %v103
    %106 = vst [vmem:[%s99] sm:$0xff] %v104
    %107 = vst [vmem:[%s99 + $0x8] sm:$0xff] %v105
    %s108 = scalar_lea.vmem [#allocation7], 48
    %v109 = vld [vmem:[%s108] sm:$0xff]
    %v110 = vld [vmem:[%s108 + $0x8] sm:$0xff]
    %v111 = vsel %vm97, %v82, 0.0
    %v112 = vsel %vm98, %v83, 0.0
    %v113 = vadd.f32 %v109, %v111
    %v114 = vadd.f32 %v110, %v112
    %115 = vst [vmem:[%s108] sm:$0xff] %v113
    %116 = vst [vmem:[%s108 + $0x8] sm:$0xff] %v114
    %vm117 = vcmp.gt.f32.partialorder %v68, 0.0
    %vm118 = vcmp.gt.f32.partialorder %v69, 0.0
    %s119 = scalar_lea.vmem [#allocation7], 64
    %v120 = vld [vmem:[%s119] sm:$0xff]
    %v121 = vld [vmem:[%s119 + $0x8] sm:$0xff]
    %v122 = vsel %vm117, %v78, 0.0
    %v123 = vsel %vm118, %v79, 0.0
    %v124 = vadd.f32 %v120, %v122
    %v125 = vadd.f32 %v121, %v123
    %126 = vst [vmem:[%s119] sm:$0xff] %v124
    %127 = vst [vmem:[%s119 + $0x8] sm:$0xff] %v125
    %s128 = scalar_lea.vmem [#allocation7], 80
    %v129 = vld [vmem:[%s128] sm:$0xff]
    %v130 = vld [vmem:[%s128 + $0x8] sm:$0xff]
    %v131 = vsel %vm117, %v82, 0.0
    %v132 = vsel %vm118, %v83, 0.0
    %v133 = vadd.f32 %v129, %v131
    %v134 = vadd.f32 %v130, %v132
    %135 = vst [vmem:[%s128] sm:$0xff] %v133
    %136 = vst [vmem:[%s128 + $0x8] sm:$0xff] %v134
    %vm137 = vcmp.gt.f32.partialorder %v68, 0.84729785
    %vm138 = vcmp.gt.f32.partialorder %v69, 0.84729785
    %s139 = scalar_lea.vmem [#allocation7], 96
    %v140 = vld [vmem:[%s139] sm:$0xff]
    %v141 = vld [vmem:[%s139 + $0x8] sm:$0xff]
    %v142 = vsel %vm137, %v78, 0.0
    %v143 = vsel %vm138, %v79, 0.0
    %v144 = vadd.f32 %v140, %v142
    %v145 = vadd.f32 %v141, %v143
    %146 = vst [vmem:[%s139] sm:$0xff] %v144
    %147 = vst [vmem:[%s139 + $0x8] sm:$0xff] %v145
    %s148 = scalar_lea.vmem [#allocation7], 112
    %v149 = vld [vmem:[%s148] sm:$0xff]
    %v150 = vld [vmem:[%s148 + $0x8] sm:$0xff]
    %v151 = vsel %vm137, %v82, 0.0
    %v152 = vsel %vm138, %v83, 0.0
    %v153 = vadd.f32 %v149, %v151
    %v154 = vadd.f32 %v150, %v152
    %155 = vst [vmem:[%s148] sm:$0xff] %v153
    %156 = vst [vmem:[%s148 + $0x8] sm:$0xff] %v154
    // Predicated region
    $region22: #{tpu_custom_call.1} parent=1 // pred_check
      _
    $region23: #{tpu_custom_call.1} parent=1 // pred_check_branch
      %158 = sbr.rel (0) target = $region25
    $region24: #{tpu_custom_call.1} parent=1 // pred_region
      %s160 = ssub.s32 2048, 2048
      %161 = vsyncadd [#allocation4], %s160
      %s162 = sshll.u32 [#allocation7], 4
      %s163 = int_to_ptr.vmem [resolvable:$true] %s162
      %168 = dma.vmem_to_hbm [thread:$0]  %s163, 2048, %s2, [#allocation4], 256, 256, 16
    $region25: #{tpu_custom_call.1} parent=1 // pred_fallthru
      _
    // Predicated region
    $region26: #{tpu_custom_call.1} parent=1 // pred_check
      _
    $region27: #{tpu_custom_call.1} parent=1 // pred_check_branch
      %170 = sbr.rel (0) target = $region29
    $region28: #{tpu_custom_call.1} parent=1 // pred_region
      %171 = dma.done [#allocation4], 2048
    $region29: #{tpu_custom_call.1} parent=1 // pred_fallthru
      _
    %172 = vsyncpa [#allocation3], 1
    %173 = vsyncpa [#allocation6], 1
    %174 = vsyncpa [#allocation4], 1

</llo_original>
